<compile_context>
chip_gen: v5e
topology: v5e:2x2
jax: 0.10.0
libtpu: 0.0.40
codegen_flags: <defaults>
</compile_context>

<pallas_src>
import functools

import jax
import jax.numpy as jnp
from jax.experimental import pallas as pl
from jax.experimental.pallas import tpu as pltpu

IMG_SIZE = 28 * 28          # 784
H = 32                      # hidden size
N = 8                       # latent size
NOISE_FACTOR = 0.2
BATCH = 2

D_PAD = 896                 # 7 * 128  (padded image dim)
H_PAD = 128                 # padded hidden dim
LAT_PAD = 128               # padded latent dim
XRE_W = 2 * D_PAD + LAT_PAD # packed [x | rnd | eps] width = 1920


def _round_up(v, m):
    return (v + m - 1) // m * m


def _vae_kernel(noise_factor,
                xre_ref,                       # (TB, 1920) f32: [x | rnd | eps]
                w_enc_ref, w_mulv_ref,         # (896,128) bf16, (128,256) bf16
                w_dec_ref, w_out_ref,          # (128,128) bf16, (128,896) bf16
                b_ref,                         # (8, 896) f32 packed biases
                y_ref, mean_ref, logvar_ref):  # (TB,896), (TB,128), (TB,128) f32
    xre = xre_ref[...]
    x = xre[:, :D_PAD]
    rnd = xre[:, D_PAD:2 * D_PAD]
    eps = xre[:, 2 * D_PAD:]

    # --- add_noise_to_input / salt_and_pepper (same apply order as PyTorch) ---
    noisy = jnp.where(rnd < noise_factor / 2.0, 1.0, x)
    noisy = jnp.where(rnd > 1.0 - noise_factor / 2.0, 0.0, noisy)

    b_enc = b_ref[0:1, :H_PAD]
    b_mulv = b_ref[1:2, :2 * LAT_PAD]
    b_dec = b_ref[2:3, :H_PAD]
    b_out = b_ref[3:4, :]

    # --- encoder ---
    h1 = jnp.dot(noisy.astype(jnp.bfloat16), w_enc_ref[...],
                 preferred_element_type=jnp.float32) + b_enc
    h1 = jnp.maximum(h1, 0.0)                                   # relu

    # fused mu || logvar head (single MXU pass, lane-dense output)
    mulv = jnp.dot(h1.astype(jnp.bfloat16), w_mulv_ref[...],
                   preferred_element_type=jnp.float32) + b_mulv
    mean = mulv[:, :LAT_PAD]
    logvar = mulv[:, LAT_PAD:]

    # --- reparameterization: z = mean + exp(0.5*logvar) * eps ---
    sd = jnp.exp(0.5 * logvar)
    z = mean + sd * eps

    # --- decoder ---
    h2 = jnp.dot(z.astype(jnp.bfloat16), w_dec_ref[...],
                 preferred_element_type=jnp.float32) + b_dec
    h2 = jnp.maximum(h2, 0.0)                                   # relu
    logits = jnp.dot(h2.astype(jnp.bfloat16), w_out_ref[...],
                     preferred_element_type=jnp.float32) + b_out
    y = pl.reciprocal(1.0 + jnp.exp(-logits), approx=True)      # sigmoid (EUP)

    y_ref[...] = y
    mean_ref[...] = mean
    logvar_ref[...] = logvar


def init_linear(key, fan_in, fan_out):
    """Deterministic init mimicking nn.Linear's uniform(-1/sqrt(in), 1/sqrt(in)).
    Weight stored as (in, out) so the kernel computes x @ W."""
    kw, kb = jax.random.split(key)
    bound = 1.0 / jnp.sqrt(jnp.float32(fan_in))
    w = jax.random.uniform(kw, (fan_in, fan_out), jnp.float32, -bound, bound)
    b = jax.random.uniform(kb, (1, fan_out), jnp.float32, -bound, bound)
    return w, b


def prepare_params(params):
    """Zero-pad to lane-aligned shapes, fuse the mu/logvar heads, pack biases, cast to bf16."""
    (w_enc, b_enc, w_mu, b_mu, w_lv, b_lv, w_dec, b_dec, w_out, b_out) = params

    w_enc_p = (jnp.zeros((D_PAD, H_PAD), jnp.float32)
               .at[:IMG_SIZE, :H].set(w_enc)).astype(jnp.bfloat16)
    w_mulv_p = (jnp.zeros((H_PAD, 2 * LAT_PAD), jnp.float32)
                .at[:H, :N].set(w_mu)
                .at[:H, LAT_PAD:LAT_PAD + N].set(w_lv)).astype(jnp.bfloat16)
    w_dec_p = (jnp.zeros((LAT_PAD, H_PAD), jnp.float32)
               .at[:N, :H].set(w_dec)).astype(jnp.bfloat16)
    w_out_p = (jnp.zeros((H_PAD, D_PAD), jnp.float32)
               .at[:H, :IMG_SIZE].set(w_out)).astype(jnp.bfloat16)

    biases = (jnp.zeros((8, D_PAD), jnp.float32)
              .at[0, :H].set(b_enc[0])
              .at[1, :N].set(b_mu[0])
              .at[1, LAT_PAD:LAT_PAD + N].set(b_lv[0])
              .at[2, :H].set(b_dec[0])
              .at[3, :IMG_SIZE].set(b_out[0]))

    return (w_enc_p, w_mulv_p, w_dec_p, w_out_p, biases)


@functools.partial(jax.jit, static_argnames=("noise_factor",))
def vae_forward(x, prep, rnd, eps, noise_factor=NOISE_FACTOR):
    b = x.shape[0]
    x_flat = x.reshape(b, IMG_SIZE).astype(jnp.float32)      # x.view(-1, 784)

    # Batch tile: at least 8 (sublane-full), up to 256 (fits v7x's 64 MiB VMEM easily).
    tile_b = min(256, _round_up(b, 8))
    b_pad = _round_up(b, tile_b)
    grid = (b_pad // tile_b,)

    def pad2(a, rows, cols):
        return jnp.pad(a, ((0, rows - a.shape[0]), (0, cols - a.shape[1])))

    # Pack x | rnd | eps into one lane-aligned streaming input -> one DMA per tile.
    xre = jnp.concatenate(
        [pad2(x_flat, b_pad, D_PAD),
         pad2(rnd.astype(jnp.float32), b_pad, D_PAD),
         pad2(eps.astype(jnp.float32), b_pad, LAT_PAD)], axis=1)      # (b_pad, 1920)

    (w_enc_p, w_mulv_p, w_dec_p, w_out_p, biases) = prep

    kernel = functools.partial(_vae_kernel, float(noise_factor))
    resident = lambda shape: pl.BlockSpec(shape, lambda i: (0, 0))

    y_pad, mean_pad, logvar_pad = pl.pallas_call(
        kernel,
        grid=grid,
        in_specs=[
            pl.BlockSpec((tile_b, XRE_W), lambda i: (i, 0)),          # x|rnd|eps tile
            resident((D_PAD, H_PAD)),                                 # w_enc
            resident((H_PAD, 2 * LAT_PAD)),                           # w_mu || w_logvar
            resident((LAT_PAD, H_PAD)),                               # w_dec
            resident((H_PAD, D_PAD)),                                 # w_out
            resident((8, D_PAD)),                                     # packed biases
        ],
        out_specs=(
            pl.BlockSpec((tile_b, D_PAD), lambda i: (i, 0)),
            pl.BlockSpec((tile_b, LAT_PAD), lambda i: (i, 0)),
            pl.BlockSpec((tile_b, LAT_PAD), lambda i: (i, 0)),
        ),
        out_shape=(
            jax.ShapeDtypeStruct((b_pad, D_PAD), jnp.float32),
            jax.ShapeDtypeStruct((b_pad, LAT_PAD), jnp.float32),
            jax.ShapeDtypeStruct((b_pad, LAT_PAD), jnp.float32),
        ),
        compiler_params=pltpu.CompilerParams(
            dimension_semantics=("parallel",)),                       # 2x on v7x megacore
    )(xre, w_enc_p, w_mulv_p, w_dec_p, w_out_p, biases)

    # Strip batch / lane padding.
    y = y_pad[:b, :IMG_SIZE]
    mean = mean_pad[:b, :N]
    logvar = logvar_pad[:b, :N]
    return y, mean, logvar


if __name__ == "__main__":
    root = jax.random.PRNGKey(0)
    k_x, k_rnd, k_eps, k1, k2, k3, k4, k5 = jax.random.split(root, 8)

    # Input images in [0,1), NCHW like the PyTorch module expects before .view(-1, 784).
    x = jax.random.uniform(k_x, (BATCH, 1, 28, 28), jnp.float32)

    # Randomness for salt-and-pepper noise (torch.rand_like) and reparam sampling
    # (torch.randn_like), generated in plain JAX and fed to the kernel.
    rnd = jax.random.uniform(k_rnd, (BATCH, IMG_SIZE), jnp.float32)
    eps = jax.random.normal(k_eps, (BATCH, N), jnp.float32)

    params = (
        *init_linear(k1, IMG_SIZE, H),   # enc:        784 -> h
        *init_linear(k2, H, N),          # enc_mu:     h   -> n
        *init_linear(k3, H, N),          # enc_logvar: h   -> n
        *init_linear(k4, N, H),          # dec:        n   -> h
        *init_linear(k5, H, IMG_SIZE),   # out:        h   -> 784
    )
    prep = prepare_params(params)

    y, mean, logvar = vae_forward(x, prep, rnd, eps)
    jax.block_until_ready((y, mean, logvar))

    assert y.shape == (BATCH, IMG_SIZE)
    assert mean.shape == (BATCH, N)
    assert logvar.shape == (BATCH, N)
    print("KERNEL_OK")
</pallas_src>

<mosaic_0001>
module attributes {stable_mosaic.version = 11 : i64} {
  func.func @_vae_kernel(%arg0: i32, %arg1: memref<8x1920xf32, #tpu.memory_space<vmem>>, %arg2: memref<896x128xbf16, #tpu.memory_space<vmem>>, %arg3: memref<128x256xbf16, #tpu.memory_space<vmem>>, %arg4: memref<128x128xbf16, #tpu.memory_space<vmem>>, %arg5: memref<128x896xbf16, #tpu.memory_space<vmem>>, %arg6: memref<8x896xf32, #tpu.memory_space<vmem>>, %arg7: memref<8x896xf32, #tpu.memory_space<vmem>>, %arg8: memref<8x128xf32, #tpu.memory_space<vmem>>, %arg9: memref<8x128xf32, #tpu.memory_space<vmem>>) attributes {dimension_semantics = [#tpu.dimension_semantics<parallel>], iteration_bounds = array<i64: 1>, scalar_prefetch = 0 : i64, scratch_operands = 0 : i64, tpu.core_type = #tpu.core_type<tc>, window_params = [{transform_indices = @transform_0, window_bounds = array<i64: 8, 1920>}, {pipeline_mode = #tpu.pipeline_mode<synchronous>, transform_indices = @transform_1, window_bounds = array<i64: 896, 128>}, {pipeline_mode = #tpu.pipeline_mode<synchronous>, transform_indices = @transform_2, window_bounds = array<i64: 128, 256>}, {pipeline_mode = #tpu.pipeline_mode<synchronous>, transform_indices = @transform_3, window_bounds = array<i64: 128, 128>}, {pipeline_mode = #tpu.pipeline_mode<synchronous>, transform_indices = @transform_4, window_bounds = array<i64: 128, 896>}, {pipeline_mode = #tpu.pipeline_mode<synchronous>, transform_indices = @transform_5, window_bounds = array<i64: 8, 896>}, {transform_indices = @transform_6, window_bounds = array<i64: 8, 896>}, {transform_indices = @transform_7, window_bounds = array<i64: 8, 128>}, {transform_indices = @transform_8, window_bounds = array<i64: 8, 128>}]} {
    %c0 = arith.constant 0 : index
    %c0_0 = arith.constant 0 : index
    %0 = vector.load %arg1[%c0, %c0_0] : memref<8x1920xf32, #tpu.memory_space<vmem>>, vector<8x1920xf32>
    %1 = vector.extract_strided_slice %0 {offsets = [0, 0], sizes = [8, 896], strides = [1, 1]} : vector<8x1920xf32> to vector<8x896xf32>
    %2 = vector.extract_strided_slice %0 {offsets = [0, 896], sizes = [8, 896], strides = [1, 1]} : vector<8x1920xf32> to vector<8x896xf32>
    %3 = vector.extract_strided_slice %0 {offsets = [0, 1792], sizes = [8, 128], strides = [1, 1]} : vector<8x1920xf32> to vector<8x128xf32>
    %cst = arith.constant 1.000000e-01 : f32
    %4 = vector.broadcast %cst : f32 to vector<8x896xf32>
    %5 = arith.cmpf olt, %2, %4 : vector<8x896xf32>
    %cst_1 = arith.constant 1.000000e+00 : f32
    %6 = vector.broadcast %cst_1 : f32 to vector<8x896xf32>
    %7 = arith.select %5, %6, %1 : vector<8x896xi1>, vector<8x896xf32>
    %cst_2 = arith.constant 0.899999976 : f32
    %8 = vector.broadcast %cst_2 : f32 to vector<8x896xf32>
    %9 = arith.cmpf ogt, %2, %8 : vector<8x896xf32>
    %cst_3 = arith.constant 0.000000e+00 : f32
    %10 = vector.broadcast %cst_3 : f32 to vector<8x896xf32>
    %11 = arith.select %9, %10, %7 : vector<8x896xi1>, vector<8x896xf32>
    %c0_4 = arith.constant 0 : index
    %c0_5 = arith.constant 0 : index
    %12 = vector.load %arg6[%c0_4, %c0_5] : memref<8x896xf32, #tpu.memory_space<vmem>>, vector<1x128xf32>
    %c1 = arith.constant 1 : index
    %c0_6 = arith.constant 0 : index
    %13 = vector.load %arg6[%c1, %c0_6] : memref<8x896xf32, #tpu.memory_space<vmem>>, vector<1x256xf32>
    %c2 = arith.constant 2 : index
    %c0_7 = arith.constant 0 : index
    %14 = vector.load %arg6[%c2, %c0_7] : memref<8x896xf32, #tpu.memory_space<vmem>>, vector<1x128xf32>
    %c3 = arith.constant 3 : index
    %c0_8 = arith.constant 0 : index
    %15 = vector.load %arg6[%c3, %c0_8] : memref<8x896xf32, #tpu.memory_space<vmem>>, vector<1x896xf32>
    %16 = arith.truncf %11 : vector<8x896xf32> to vector<8x896xbf16>
    %c0_9 = arith.constant 0 : index
    %c0_10 = arith.constant 0 : index
    %17 = vector.load %arg2[%c0_9, %c0_10] : memref<896x128xbf16, #tpu.memory_space<vmem>>, vector<896x128xbf16>
    %cst_11 = arith.constant dense<0.000000e+00> : vector<8x128xf32>
    %18 = tpu.matmul %16, %17, %cst_11 {dimension_numbers = #tpu.dot_dimension_numbers<[1], [0], [0], [1], [0, 0, 1, 1], [], []>} : vector<8x896xbf16>, vector<896x128xbf16>, vector<8x128xf32> -> vector<8x128xf32>
    %19 = vector.broadcast %12 : vector<1x128xf32> to vector<8x128xf32>
    %20 = arith.addf %18, %19 : vector<8x128xf32>
    %cst_12 = arith.constant 0.000000e+00 : f32
    %21 = vector.broadcast %cst_12 : f32 to vector<8x128xf32>
    %22 = arith.maximumf %20, %21 : vector<8x128xf32>
    %23 = arith.truncf %22 : vector<8x128xf32> to vector<8x128xbf16>
    %c0_13 = arith.constant 0 : index
    %c0_14 = arith.constant 0 : index
    %24 = vector.load %arg3[%c0_13, %c0_14] : memref<128x256xbf16, #tpu.memory_space<vmem>>, vector<128x256xbf16>
    %cst_15 = arith.constant dense<0.000000e+00> : vector<8x256xf32>
    %25 = tpu.matmul %23, %24, %cst_15 {dimension_numbers = #tpu.dot_dimension_numbers<[1], [0], [0], [1], [0, 0, 1, 1], [], []>} : vector<8x128xbf16>, vector<128x256xbf16>, vector<8x256xf32> -> vector<8x256xf32>
    %26 = vector.broadcast %13 : vector<1x256xf32> to vector<8x256xf32>
    %27 = arith.addf %25, %26 : vector<8x256xf32>
    %28 = vector.extract_strided_slice %27 {offsets = [0, 0], sizes = [8, 128], strides = [1, 1]} : vector<8x256xf32> to vector<8x128xf32>
    %29 = vector.extract_strided_slice %27 {offsets = [0, 128], sizes = [8, 128], strides = [1, 1]} : vector<8x256xf32> to vector<8x128xf32>
    %cst_16 = arith.constant 5.000000e-01 : f32
    %30 = vector.broadcast %cst_16 : f32 to vector<8x128xf32>
    %31 = arith.mulf %30, %29 : vector<8x128xf32>
    %32 = math.exp %31 : vector<8x128xf32>
    %33 = arith.mulf %32, %3 : vector<8x128xf32>
    %34 = arith.addf %28, %33 : vector<8x128xf32>
    %35 = arith.truncf %34 : vector<8x128xf32> to vector<8x128xbf16>
    %c0_17 = arith.constant 0 : index
    %c0_18 = arith.constant 0 : index
    %36 = vector.load %arg4[%c0_17, %c0_18] : memref<128x128xbf16, #tpu.memory_space<vmem>>, vector<128x128xbf16>
    %cst_19 = arith.constant dense<0.000000e+00> : vector<8x128xf32>
    %37 = tpu.matmul %35, %36, %cst_19 {dimension_numbers = #tpu.dot_dimension_numbers<[1], [0], [0], [1], [0, 0, 1, 1], [], []>} : vector<8x128xbf16>, vector<128x128xbf16>, vector<8x128xf32> -> vector<8x128xf32>
    %38 = vector.broadcast %14 : vector<1x128xf32> to vector<8x128xf32>
    %39 = arith.addf %37, %38 : vector<8x128xf32>
    %cst_20 = arith.constant 0.000000e+00 : f32
    %40 = vector.broadcast %cst_20 : f32 to vector<8x128xf32>
    %41 = arith.maximumf %39, %40 : vector<8x128xf32>
    %42 = arith.truncf %41 : vector<8x128xf32> to vector<8x128xbf16>
    %c0_21 = arith.constant 0 : index
    %c0_22 = arith.constant 0 : index
    %43 = vector.load %arg5[%c0_21, %c0_22] : memref<128x896xbf16, #tpu.memory_space<vmem>>, vector<128x896xbf16>
    %cst_23 = arith.constant dense<0.000000e+00> : vector<8x896xf32>
    %44 = tpu.matmul %42, %43, %cst_23 {dimension_numbers = #tpu.dot_dimension_numbers<[1], [0], [0], [1], [0, 0, 1, 1], [], []>} : vector<8x128xbf16>, vector<128x896xbf16>, vector<8x896xf32> -> vector<8x896xf32>
    %45 = vector.broadcast %15 : vector<1x896xf32> to vector<8x896xf32>
    %46 = arith.addf %44, %45 : vector<8x896xf32>
    %cst_24 = arith.constant 0.000000e+00 : f32
    %47 = vector.broadcast %cst_24 : f32 to vector<8x896xf32>
    %48 = arith.subf %47, %46 : vector<8x896xf32>
    %49 = math.exp %48 : vector<8x896xf32>
    %cst_25 = arith.constant 1.000000e+00 : f32
    %50 = vector.broadcast %cst_25 : f32 to vector<8x896xf32>
    %51 = arith.addf %50, %49 : vector<8x896xf32>
    %52 = tpu.reciprocal %51 {approx = true} : vector<8x896xf32> -> vector<8x896xf32>
    %c0_26 = arith.constant 0 : index
    %c0_27 = arith.constant 0 : index
    %53 = vector.load %arg7[%c0_26, %c0_27] : memref<8x896xf32, #tpu.memory_space<vmem>>, vector<8x896xf32>
    tpu.vector_store %arg7[%c0_26, %c0_27], %52 {strides = array<i32>} : memref<8x896xf32, #tpu.memory_space<vmem>>, vector<8x896xf32>,
    %c0_28 = arith.constant 0 : index
    %c0_29 = arith.constant 0 : index
    %54 = vector.load %arg8[%c0_28, %c0_29] : memref<8x128xf32, #tpu.memory_space<vmem>>, vector<8x128xf32>
    tpu.vector_store %arg8[%c0_28, %c0_29], %28 {strides = array<i32>} : memref<8x128xf32, #tpu.memory_space<vmem>>, vector<8x128xf32>,
    %c0_30 = arith.constant 0 : index
    %c0_31 = arith.constant 0 : index
    %55 = vector.load %arg9[%c0_30, %c0_31] : memref<8x128xf32, #tpu.memory_space<vmem>>, vector<8x128xf32>
    tpu.vector_store %arg9[%c0_30, %c0_31], %29 {strides = array<i32>} : memref<8x128xf32, #tpu.memory_space<vmem>>, vector<8x128xf32>,
    return
  }
  func.func @transform_0(%arg0: i32) -> (i32, i32) {
    %c0_i32 = arith.constant 0 : i32
    %c0_i32_0 = arith.constant 0 : i32
    return %arg0, %c0_i32 : i32, i32
  }
  func.func @transform_1(%arg0: i32) -> (i32, i32) {
    %c0_i32 = arith.constant 0 : i32
    %c0_i32_0 = arith.constant 0 : i32
    %c0_i32_1 = arith.constant 0 : i32
    return %c0_i32, %c0_i32_0 : i32, i32
  }
  func.func @transform_2(%arg0: i32) -> (i32, i32) {
    %c0_i32 = arith.constant 0 : i32
    %c0_i32_0 = arith.constant 0 : i32
    %c0_i32_1 = arith.constant 0 : i32
    return %c0_i32, %c0_i32_0 : i32, i32
  }
  func.func @transform_3(%arg0: i32) -> (i32, i32) {
    %c0_i32 = arith.constant 0 : i32
    %c0_i32_0 = arith.constant 0 : i32
    %c0_i32_1 = arith.constant 0 : i32
    return %c0_i32, %c0_i32_0 : i32, i32
  }
  func.func @transform_4(%arg0: i32) -> (i32, i32) {
    %c0_i32 = arith.constant 0 : i32
    %c0_i32_0 = arith.constant 0 : i32
    %c0_i32_1 = arith.constant 0 : i32
    return %c0_i32, %c0_i32_0 : i32, i32
  }
  func.func @transform_5(%arg0: i32) -> (i32, i32) {
    %c0_i32 = arith.constant 0 : i32
    %c0_i32_0 = arith.constant 0 : i32
    %c0_i32_1 = arith.constant 0 : i32
    return %c0_i32, %c0_i32_0 : i32, i32
  }
  func.func @transform_6(%arg0: i32) -> (i32, i32) {
    %c0_i32 = arith.constant 0 : i32
    %c0_i32_0 = arith.constant 0 : i32
    return %arg0, %c0_i32 : i32, i32
  }
  func.func @transform_7(%arg0: i32) -> (i32, i32) {
    %c0_i32 = arith.constant 0 : i32
    %c0_i32_0 = arith.constant 0 : i32
    return %arg0, %c0_i32 : i32, i32
  }
  func.func @transform_8(%arg0: i32) -> (i32, i32) {
    %c0_i32 = arith.constant 0 : i32
    %c0_i32_0 = arith.constant 0 : i32
    return %arg0, %c0_i32 : i32, i32
  }
}

</mosaic_0001>

<llo_original>
// kernel: vae_forward.1
$region0: #{vae_forward.1}
  #allocation0 [shape = 'u32[]', space=smem, size = 0x4, offset = 0x4, fixed_abs, tag = 'smem constant byte address 0x4 - core index']
  #allocation1 [shape = 'u32[72,128]{1,0:T(1,128)}', space=vmem, size = 0x9000, scoped, tag = 'internal scratch']
  %s0 = inlined_call_operand.vmem [shape: f32[8,1920], index: 0, kind: input, shape index: {}]
  %s1 = inlined_call_operand.hbm [shape: bf16[896,128], index: 1, kind: input, shape index: {}]
  %s2 = inlined_call_operand.vmem [shape: bf16[128,256], index: 2, kind: input, shape index: {}]
  %s3 = inlined_call_operand.vmem [shape: bf16[128,128], index: 3, kind: input, shape index: {}]
  %s4 = inlined_call_operand.hbm [shape: bf16[128,896], index: 4, kind: input, shape index: {}]
  %s5 = inlined_call_operand.vmem [shape: f32[8,896], index: 5, kind: input, shape index: {}]
  %s6 = inlined_call_operand.vmem [shape: f32[8,896], index: 6, kind: output, shape index: {0}]
  %s7 = inlined_call_operand.vmem [shape: f32[8,128], index: 7, kind: output, shape index: {1}]
  %s8 = inlined_call_operand.vmem [shape: f32[8,128], index: 8, kind: output, shape index: {2}]
  %9 = xla_tuple %s6, %s7, %s8
  %s10 = sld [smem:[#allocation0]]
  $region58: #{vae_forward.1} parent=0
    _
  %s12 = ssub.s32 1, %s10
  %s13 = scalar_select 0, %s12, %s10
  $region1: #{vae_forward.1} parent=0
    #allocation2 [shape = 'u8[229376]{0}', space=vmem, size = 0x38000, scoped, tag = 'input window, operand 1, single buffered']
    #allocation3 [shape = 's32[1]{0}', space=sflag, size = 0x4, scoped, tag = 'scoped memory for vae_forward.1']
    #allocation4 [shape = 'u8[229376]{0}', space=vmem, size = 0x38000, scoped, tag = 'input window, operand 4, single buffered']
    #allocation5 [shape = 's32[1]{0}', space=sflag, size = 0x4, scoped, tag = 'scoped memory for vae_forward.1']
    %14 = vsyncpa [#allocation3], 0
    %15 = vsyncpa [#allocation5], 0
    // Predicated region
    $region2: #{vae_forward.1} parent=1 // pred_check
      _
    $region3: #{vae_forward.1} parent=1 // pred_check_branch
      %17 = sbr.rel (0) target = $region5
    $region4: #{vae_forward.1} parent=1 // pred_region
      _
    $region5: #{vae_forward.1} parent=1 // pred_fallthru
      _
    // Predicated region
    $region6: #{vae_forward.1} parent=1 // pred_check
      _
    $region7: #{vae_forward.1} parent=1 // pred_check_branch
      %19 = sbr.rel (0) target = $region9
    $region8: #{vae_forward.1} parent=1 // pred_region
      %21 = vsyncadd [#allocation3], 0
      %s22 = sshll.u32 %s1, 4
      %s23 = int_to_ptr.hbm [resolvable:$true] %s22
      %s24 = sshll.u32 [#allocation2], 4
      %s25 = int_to_ptr.vmem [resolvable:$true] %s24
      %30 = dma.hbm_to_vmem [thread:$0]  %s23, 7168, %s25, [#allocation3], 64, 64, 4
    $region9: #{vae_forward.1} parent=1 // pred_fallthru
      _
    // Predicated region
    $region10: #{vae_forward.1} parent=1 // pred_check
      _
    $region11: #{vae_forward.1} parent=1 // pred_check_branch
      %32 = sbr.rel (0) target = $region13
    $region12: #{vae_forward.1} parent=1 // pred_region
      _
    $region13: #{vae_forward.1} parent=1 // pred_fallthru
      _
    // Predicated region
    $region14: #{vae_forward.1} parent=1 // pred_check
      _
    $region15: #{vae_forward.1} parent=1 // pred_check_branch
      %34 = sbr.rel (0) target = $region17
    $region16: #{vae_forward.1} parent=1 // pred_region
      _
    $region17: #{vae_forward.1} parent=1 // pred_fallthru
      _
    // Predicated region
    $region18: #{vae_forward.1} parent=1 // pred_check
      _
    $region19: #{vae_forward.1} parent=1 // pred_check_branch
      %36 = sbr.rel (0) target = $region21
    $region20: #{vae_forward.1} parent=1 // pred_region
      %38 = vsyncadd [#allocation5], 0
      %s39 = sshll.u32 %s4, 4
      %s40 = int_to_ptr.hbm [resolvable:$true] %s39
      %s41 = sshll.u32 [#allocation4], 4
      %s42 = int_to_ptr.vmem [resolvable:$true] %s41
      %47 = dma.hbm_to_vmem [thread:$0]  %s40, 7168, %s42, [#allocation5], 448, 448, 28
    $region21: #{vae_forward.1} parent=1 // pred_fallthru
      _
    // Predicated region
    $region22: #{vae_forward.1} parent=1 // pred_check
      _
    $region23: #{vae_forward.1} parent=1 // pred_check_branch
      %49 = sbr.rel (0) target = $region25
    $region24: #{vae_forward.1} parent=1 // pred_region
      _
    $region25: #{vae_forward.1} parent=1 // pred_fallthru
      _
    // Predicated region
    $region26: #{vae_forward.1} parent=1 // pred_check
      _
    $region27: #{vae_forward.1} parent=1 // pred_check_branch
      %51 = sbr.rel (0) target = $region29
    $region28: #{vae_forward.1} parent=1 // pred_region
      %53 = dma.done [#allocation3], 7168
    $region29: #{vae_forward.1} parent=1 // pred_fallthru
      _
    // Predicated region
    $region30: #{vae_forward.1} parent=1 // pred_check
      _
    $region31: #{vae_forward.1} parent=1 // pred_check_branch
      %55 = sbr.rel (0) target = $region33
    $region32: #{vae_forward.1} parent=1 // pred_region
      %57 = dma.done [#allocation5], 7168
    $region33: #{vae_forward.1} parent=1 // pred_fallthru
      _
    %v58 = vld [vmem:[%s0] sm:$0xff]
    %v59 = vld [vmem:[%s0 + $0x8] sm:$0xff]
    %v60 = vld [vmem:[%s0 + $0x10] sm:$0xff]
    %v61 = vld [vmem:[%s0 + $0x18] sm:$0xff]
    %v62 = vld [vmem:[%s0 + $0x20] sm:$0xff]
    %v63 = vld [vmem:[%s0 + $0x28] sm:$0xff]
    %v64 = vld [vmem:[%s0 + $0x30] sm:$0xff]
    %v65 = vld [vmem:[%s0 + $0x38] sm:$0xff]
    %v66 = vld [vmem:[%s0 + $0x40] sm:$0xff]
    %v67 = vld [vmem:[%s0 + $0x48] sm:$0xff]
    %v68 = vld [vmem:[%s0 + $0x50] sm:$0xff]
    %v69 = vld [vmem:[%s0 + $0x58] sm:$0xff]
    %v70 = vld [vmem:[%s0 + $0x60] sm:$0xff]
    %v71 = vld [vmem:[%s0 + $0x68] sm:$0xff]
    %v72 = vld [vmem:[%s0 + $0x70] sm:$0xff]
    %vm73 = vcmp.lt.f32.partialorder %v65, 0.1
    %vm74 = vcmp.lt.f32.partialorder %v66, 0.1
    %vm75 = vcmp.lt.f32.partialorder %v67, 0.1
    %vm76 = vcmp.lt.f32.partialorder %v68, 0.1
    %vm77 = vcmp.lt.f32.partialorder %v69, 0.1
    %vm78 = vcmp.lt.f32.partialorder %v70, 0.1
    %vm79 = vcmp.lt.f32.partialorder %v71, 0.1
    %v80 = vsel %vm73, 1.0, %v58
    %v81 = vsel %vm74, 1.0, %v59
    %v82 = vsel %vm75, 1.0, %v60
    %v83 = vsel %vm76, 1.0, %v61
    %v84 = vsel %vm77, 1.0, %v62
    %v85 = vsel %vm78, 1.0, %v63
    %v86 = vsel %vm79, 1.0, %v64
    %vm87 = vcmp.gt.f32.partialorder %v65, 0.9
    %vm88 = vcmp.gt.f32.partialorder %v66, 0.9
    %vm89 = vcmp.gt.f32.partialorder %v67, 0.9
    %vm90 = vcmp.gt.f32.partialorder %v68, 0.9
    %vm91 = vcmp.gt.f32.partialorder %v69, 0.9
    %vm92 = vcmp.gt.f32.partialorder %v70, 0.9
    %vm93 = vcmp.gt.f32.partialorder %v71, 0.9
    %v94 = vsel %vm87, 0.0, %v80
    %v95 = vsel %vm88, 0.0, %v81
    %v96 = vsel %vm89, 0.0, %v82
    %v97 = vsel %vm90, 0.0, %v83
    %v98 = vsel %vm91, 0.0, %v84
    %v99 = vsel %vm92, 0.0, %v85
    %v100 = vsel %vm93, 0.0, %v86
    %v101 = vld [vmem:[%s5] ss:$0 sm:$0xff]
    %s102 = scalar_lea.vmem %s5, 1
    %v103 = vld [vmem:[%s102] ss:$8 sm:$0x3]
    %v104 = vld [vmem:[%s5 + $0x2] ss:$0 sm:$0xff]
    %s105 = scalar_lea.vmem %s5, 3
    %v106 = vld [vmem:[%s105] ss:$8 sm:$0xf]
    %v107 = vld [vmem:[%s105] ss:$8 sm:$0xf0]
    %v108 = vor.u32 %v106, %v107
    %v109 = vpack.c.bf16 %v94, %v94
    %v110 = vpack.c.bf16 %v95, %v95
    %v111 = vpack.c.bf16 %v96, %v96
    %v112 = vpack.c.bf16 %v97, %v97
    %v113 = vpack.c.bf16 %v98, %v98
    %v114 = vpack.c.bf16 %v99, %v99
    %v115 = vpack.c.bf16 %v100, %v100
    %v116 = vld [vmem:[#allocation2] sm:$0xf]
    %v117 = vld [vmem:[#allocation2 + $0x4] sm:$0xf]
    %v118 = vld [vmem:[#allocation2 + $0x8] sm:$0xf]
    %v119 = vld [vmem:[#allocation2 + $0xc] sm:$0xf]
    %v120 = vld [vmem:[#allocation2 + $0x10] sm:$0xf]
    %v121 = vld [vmem:[#allocation2 + $0x14] sm:$0xf]
    %v122 = vld [vmem:[#allocation2 + $0x18] sm:$0xf]
    %v123 = vld [vmem:[#allocation2 + $0x1c] sm:$0xf]
    %v124 = vld [vmem:[#allocation2 + $0x20] sm:$0xf]
    %v125 = vld [vmem:[#allocation2 + $0x24] sm:$0xf]
    %v126 = vld [vmem:[#allocation2 + $0x28] sm:$0xf]
    %v127 = vld [vmem:[#allocation2 + $0x2c] sm:$0xf]
    %v128 = vld [vmem:[#allocation2 + $0x30] sm:$0xf]
    %v129 = vld [vmem:[#allocation2 + $0x34] sm:$0xf]
    %v130 = vld [vmem:[#allocation2 + $0x38] sm:$0xf]
    %v131 = vld [vmem:[#allocation2 + $0x3c] sm:$0xf]
    %v132 = vld [vmem:[#allocation2 + $0x40] sm:$0xf]
    %v133 = vld [vmem:[#allocation2 + $0x44] sm:$0xf]
    %v134 = vld [vmem:[#allocation2 + $0x48] sm:$0xf]
    %v135 = vld [vmem:[#allocation2 + $0x4c] sm:$0xf]
    %v136 = vld [vmem:[#allocation2 + $0x50] sm:$0xf]
    %v137 = vld [vmem:[#allocation2 + $0x54] sm:$0xf]
    %v138 = vld [vmem:[#allocation2 + $0x58] sm:$0xf]
    %v139 = vld [vmem:[#allocation2 + $0x5c] sm:$0xf]
    %v140 = vld [vmem:[#allocation2 + $0x60] sm:$0xf]
    %v141 = vld [vmem:[#allocation2 + $0x64] sm:$0xf]
    %v142 = vld [vmem:[#allocation2 + $0x68] sm:$0xf]
    %v143 = vld [vmem:[#allocation2 + $0x6c] sm:$0xf]
    %v144 = vld [vmem:[#allocation2 + $0x70] sm:$0xf]
    %v145 = vld [vmem:[#allocation2 + $0x74] sm:$0xf]
    %v146 = vld [vmem:[#allocation2 + $0x78] sm:$0xf]
    %v147 = vld [vmem:[#allocation2 + $0x7c] sm:$0xf]
    %v148 = vld [vmem:[#allocation2 + $0x80] sm:$0xf]
    %v149 = vld [vmem:[#allocation2 + $0x84] sm:$0xf]
    %v150 = vld [vmem:[#allocation2 + $0x88] sm:$0xf]
    %v151 = vld [vmem:[#allocation2 + $0x8c] sm:$0xf]
    %v152 = vld [vmem:[#allocation2 + $0x90] sm:$0xf]
    %v153 = vld [vmem:[#allocation2 + $0x94] sm:$0xf]
    %v154 = vld [vmem:[#allocation2 + $0x98] sm:$0xf]
    %v155 = vld [vmem:[#allocation2 + $0x9c] sm:$0xf]
    %v156 = vld [vmem:[#allocation2 + $0xa0] sm:$0xf]
    %v157 = vld [vmem:[#allocation2 + $0xa4] sm:$0xf]
    %v158 = vld [vmem:[#allocation2 + $0xa8] sm:$0xf]
    %v159 = vld [vmem:[#allocation2 + $0xac] sm:$0xf]
    %v160 = vld [vmem:[#allocation2 + $0xb0] sm:$0xf]
    %v161 = vld [vmem:[#allocation2 + $0xb4] sm:$0xf]
    %v162 = vld [vmem:[#allocation2 + $0xb8] sm:$0xf]
    %v163 = vld [vmem:[#allocation2 + $0xbc] sm:$0xf]
    %v164 = vld [vmem:[#allocation2 + $0xc0] sm:$0xf]
    %v165 = vld [vmem:[#allocation2 + $0xc4] sm:$0xf]
    %v166 = vld [vmem:[#allocation2 + $0xc8] sm:$0xf]
    %v167 = vld [vmem:[#allocation2 + $0xcc] sm:$0xf]
    %v168 = vld [vmem:[#allocation2 + $0xd0] sm:$0xf]
    %v169 = vld [vmem:[#allocation2 + $0xd4] sm:$0xf]
    %v170 = vld [vmem:[#allocation2 + $0xd8] sm:$0xf]
    %v171 = vld [vmem:[#allocation2 + $0xdc] sm:$0xf]
    %v172 = vld [vmem:[#allocation2 + $0xe0] sm:$0xf]
    %v173 = vld [vmem:[#allocation2 + $0xe4] sm:$0xf]
    %v174 = vld [vmem:[#allocation2 + $0xe8] sm:$0xf]
    %v175 = vld [vmem:[#allocation2 + $0xec] sm:$0xf]
    %v176 = vld [vmem:[#allocation2 + $0xf0] sm:$0xf]
    %v177 = vld [vmem:[#allocation2 + $0xf4] sm:$0xf]
    %v178 = vld [vmem:[#allocation2 + $0xf8] sm:$0xf]
    %v179 = vld [vmem:[#allocation2 + $0xfc] sm:$0xf]
    %v180 = vld [vmem:[#allocation2 + $0x100] sm:$0xf]
    %v181 = vld [vmem:[#allocation2 + $0x104] sm:$0xf]
    %v182 = vld [vmem:[#allocation2 + $0x108] sm:$0xf]
    %v183 = vld [vmem:[#allocation2 + $0x10c] sm:$0xf]
    %v184 = vld [vmem:[#allocation2 + $0x110] sm:$0xf]
    %v185 = vld [vmem:[#allocation2 + $0x114] sm:$0xf]
    %v186 = vld [vmem:[#allocation2 + $0x118] sm:$0xf]
    %v187 = vld [vmem:[#allocation2 + $0x11c] sm:$0xf]
    %v188 = vld [vmem:[#allocation2 + $0x120] sm:$0xf]
    %v189 = vld [vmem:[#allocation2 + $0x124] sm:$0xf]
    %v190 = vld [vmem:[#allocation2 + $0x128] sm:$0xf]
    %v191 = vld [vmem:[#allocation2 + $0x12c] sm:$0xf]
    %v192 = vld [vmem:[#allocation2 + $0x130] sm:$0xf]
    %v193 = vld [vmem:[#allocation2 + $0x134] sm:$0xf]
    %v194 = vld [vmem:[#allocation2 + $0x138] sm:$0xf]
    %v195 = vld [vmem:[#allocation2 + $0x13c] sm:$0xf]
    %v196 = vld [vmem:[#allocation2 + $0x140] sm:$0xf]
    %v197 = vld [vmem:[#allocation2 + $0x144] sm:$0xf]
    %v198 = vld [vmem:[#allocation2 + $0x148] sm:$0xf]
    %v199 = vld [vmem:[#allocation2 + $0x14c] sm:$0xf]
    %v200 = vld [vmem:[#allocation2 + $0x150] sm:$0xf]
    %v201 = vld [vmem:[#allocation2 + $0x154] sm:$0xf]
    %v202 = vld [vmem:[#allocation2 + $0x158] sm:$0xf]
    %v203 = vld [vmem:[#allocation2 + $0x15c] sm:$0xf]
    %v204 = vld [vmem:[#allocation2 + $0x160] sm:$0xf]
    %v205 = vld [vmem:[#allocation2 + $0x164] sm:$0xf]
    %v206 = vld [vmem:[#allocation2 + $0x168] sm:$0xf]
    %v207 = vld [vmem:[#allocation2 + $0x16c] sm:$0xf]
    %v208 = vld [vmem:[#allocation2 + $0x170] sm:$0xf]
    %v209 = vld [vmem:[#allocation2 + $0x174] sm:$0xf]
    %v210 = vld [vmem:[#allocation2 + $0x178] sm:$0xf]
    %v211 = vld [vmem:[#allocation2 + $0x17c] sm:$0xf]
    %v212 = vld [vmem:[#allocation2 + $0x180] sm:$0xf]
    %v213 = vld [vmem:[#allocation2 + $0x184] sm:$0xf]
    %v214 = vld [vmem:[#allocation2 + $0x188] sm:$0xf]
    %v215 = vld [vmem:[#allocation2 + $0x18c] sm:$0xf]
    %v216 = vld [vmem:[#allocation2 + $0x190] sm:$0xf]
    %v217 = vld [vmem:[#allocation2 + $0x194] sm:$0xf]
    %v218 = vld [vmem:[#allocation2 + $0x198] sm:$0xf]
    %v219 = vld [vmem:[#allocation2 + $0x19c] sm:$0xf]
    %v220 = vld [vmem:[#allocation2 + $0x1a0] sm:$0xf]
    %v221 = vld [vmem:[#allocation2 + $0x1a4] sm:$0xf]
    %v222 = vld [vmem:[#allocation2 + $0x1a8] sm:$0xf]
    %v223 = vld [vmem:[#allocation2 + $0x1ac] sm:$0xf]
    %v224 = vld [vmem:[#allocation2 + $0x1b0] sm:$0xf]
    %v225 = vld [vmem:[#allocation2 + $0x1b4] sm:$0xf]
    %v226 = vld [vmem:[#allocation2 + $0x1b8] sm:$0xf]
    %v227 = vld [vmem:[#allocation2 + $0x1bc] sm:$0xf]
    %v340 = vunpack.c.l.b16 %v116
    %v341 = vunpack.c.l.b16 %v117
    %v342 = vunpack.c.l.b16 %v118
    %v343 = vunpack.c.l.b16 %v119
    %v344 = vunpack.c.l.b16 %v120
    %v345 = vunpack.c.l.b16 %v121
    %v346 = vunpack.c.l.b16 %v122
    %v347 = vunpack.c.l.b16 %v123
    %v348 = vunpack.c.l.b16 %v124
    %v349 = vunpack.c.l.b16 %v125
    %v350 = vunpack.c.l.b16 %v126
    %v351 = vunpack.c.l.b16 %v127
    %v352 = vunpack.c.l.b16 %v128
    %v353 = vunpack.c.l.b16 %v129
    %v354 = vunpack.c.l.b16 %v130
    %v355 = vunpack.c.l.b16 %v131
    %v356 = vunpack.c.l.b16 %v132
    %v357 = vunpack.c.l.b16 %v133
    %v358 = vunpack.c.l.b16 %v134
    %v359 = vunpack.c.l.b16 %v135
    %v360 = vunpack.c.l.b16 %v136
    %v361 = vunpack.c.l.b16 %v137
    %v362 = vunpack.c.l.b16 %v138
    %v363 = vunpack.c.l.b16 %v139
    %v364 = vunpack.c.l.b16 %v140
    %v365 = vunpack.c.l.b16 %v141
    %v366 = vunpack.c.l.b16 %v142
    %v367 = vunpack.c.l.b16 %v143
    %v368 = vunpack.c.l.b16 %v144
    %v369 = vunpack.c.l.b16 %v145
    %v370 = vunpack.c.l.b16 %v146
    %v371 = vunpack.c.l.b16 %v147
    %v372 = vunpack.c.l.b16 %v148
    %v373 = vunpack.c.l.b16 %v149
    %v374 = vunpack.c.l.b16 %v150
    %v375 = vunpack.c.l.b16 %v151
    %v376 = vunpack.c.l.b16 %v152
    %v377 = vunpack.c.l.b16 %v153
    %v378 = vunpack.c.l.b16 %v154
    %v379 = vunpack.c.l.b16 %v155
    %v380 = vunpack.c.l.b16 %v156
    %v381 = vunpack.c.l.b16 %v157
    %v382 = vunpack.c.l.b16 %v158
    %v383 = vunpack.c.l.b16 %v159
    %v384 = vunpack.c.l.b16 %v160
    %v385 = vunpack.c.l.b16 %v161
    %v386 = vunpack.c.l.b16 %v162
    %v387 = vunpack.c.l.b16 %v163
    %v388 = vunpack.c.l.b16 %v164
    %v389 = vunpack.c.l.b16 %v165
    %v390 = vunpack.c.l.b16 %v166
    %v391 = vunpack.c.l.b16 %v167
    %v392 = vunpack.c.l.b16 %v168
    %v393 = vunpack.c.l.b16 %v169
    %v394 = vunpack.c.l.b16 %v170
    %v395 = vunpack.c.l.b16 %v171
    %v396 = vunpack.c.l.b16 %v172
    %v397 = vunpack.c.l.b16 %v173
    %v398 = vunpack.c.l.b16 %v174
    %v399 = vunpack.c.l.b16 %v175
    %v400 = vunpack.c.l.b16 %v176
    %v401 = vunpack.c.l.b16 %v177
    %v402 = vunpack.c.l.b16 %v178
    %v403 = vunpack.c.l.b16 %v179
    %v404 = vunpack.c.l.b16 %v180
    %v405 = vunpack.c.l.b16 %v181
    %v406 = vunpack.c.l.b16 %v182
    %v407 = vunpack.c.l.b16 %v183
    %v408 = vunpack.c.l.b16 %v184
    %v409 = vunpack.c.l.b16 %v185
    %v410 = vunpack.c.l.b16 %v186
    %v411 = vunpack.c.l.b16 %v187
    %v412 = vunpack.c.l.b16 %v188
    %v413 = vunpack.c.l.b16 %v189
    %v414 = vunpack.c.l.b16 %v190
    %v415 = vunpack.c.l.b16 %v191
    %v416 = vunpack.c.l.b16 %v192
    %v417 = vunpack.c.l.b16 %v193
    %v418 = vunpack.c.l.b16 %v194
    %v419 = vunpack.c.l.b16 %v195
    %v420 = vunpack.c.l.b16 %v196
    %v421 = vunpack.c.l.b16 %v197
    %v422 = vunpack.c.l.b16 %v198
    %v423 = vunpack.c.l.b16 %v199
    %v424 = vunpack.c.l.b16 %v200
    %v425 = vunpack.c.l.b16 %v201
    %v426 = vunpack.c.l.b16 %v202
    %v427 = vunpack.c.l.b16 %v203
    %v428 = vunpack.c.l.b16 %v204
    %v429 = vunpack.c.l.b16 %v205
    %v430 = vunpack.c.l.b16 %v206
    %v431 = vunpack.c.l.b16 %v207
    %v432 = vunpack.c.l.b16 %v208
    %v433 = vunpack.c.l.b16 %v209
    %v434 = vunpack.c.l.b16 %v210
    %v435 = vunpack.c.l.b16 %v211
    %v436 = vunpack.c.l.b16 %v212
    %v437 = vunpack.c.l.b16 %v213
    %v438 = vunpack.c.l.b16 %v214
    %v439 = vunpack.c.l.b16 %v215
    %v440 = vunpack.c.l.b16 %v216
    %v441 = vunpack.c.l.b16 %v217
    %v442 = vunpack.c.l.b16 %v218
    %v443 = vunpack.c.l.b16 %v219
    %v444 = vunpack.c.l.b16 %v220
    %v445 = vunpack.c.l.b16 %v221
    %v446 = vunpack.c.l.b16 %v222
    %v447 = vunpack.c.l.b16 %v223
    %v448 = vunpack.c.l.b16 %v224
    %v449 = vunpack.c.l.b16 %v225
    %v450 = vunpack.c.l.b16 %v226
    %v451 = vunpack.c.l.b16 %v227
    %v452 = vpack.c.b16 %v341, %v340
    %v453 = vpack.c.b16 %v343, %v342
    %v454 = vpack.c.b16 %v345, %v344
    %v455 = vpack.c.b16 %v347, %v346
    %v456 = vpack.c.b16 %v349, %v348
    %v457 = vpack.c.b16 %v351, %v350
    %v458 = vpack.c.b16 %v353, %v352
    %v459 = vpack.c.b16 %v355, %v354
    %v460 = vpack.c.b16 %v357, %v356
    %v461 = vpack.c.b16 %v359, %v358
    %v462 = vpack.c.b16 %v361, %v360
    %v463 = vpack.c.b16 %v363, %v362
    %v464 = vpack.c.b16 %v365, %v364
    %v465 = vpack.c.b16 %v367, %v366
    %v466 = vpack.c.b16 %v369, %v368
    %v467 = vpack.c.b16 %v371, %v370
    %v468 = vpack.c.b16 %v373, %v372
    %v469 = vpack.c.b16 %v375, %v374
    %v470 = vpack.c.b16 %v377, %v376
    %v471 = vpack.c.b16 %v379, %v378
    %v472 = vpack.c.b16 %v381, %v380
    %v473 = vpack.c.b16 %v383, %v382
    %v474 = vpack.c.b16 %v385, %v384
    %v475 = vpack.c.b16 %v387, %v386
    %v476 = vpack.c.b16 %v389, %v388
    %v477 = vpack.c.b16 %v391, %v390
    %v478 = vpack.c.b16 %v393, %v392
    %v479 = vpack.c.b16 %v395, %v394
    %v480 = vpack.c.b16 %v397, %v396
    %v481 = vpack.c.b16 %v399, %v398
    %v482 = vpack.c.b16 %v401, %v400
    %v483 = vpack.c.b16 %v403, %v402
    %v484 = vpack.c.b16 %v405, %v404
    %v485 = vpack.c.b16 %v407, %v406
    %v486 = vpack.c.b16 %v409, %v408
    %v487 = vpack.c.b16 %v411, %v410
    %v488 = vpack.c.b16 %v413, %v412
    %v489 = vpack.c.b16 %v415, %v414
    %v490 = vpack.c.b16 %v417, %v416
    %v491 = vpack.c.b16 %v419, %v418
    %v492 = vpack.c.b16 %v421, %v420
    %v493 = vpack.c.b16 %v423, %v422
    %v494 = vpack.c.b16 %v425, %v424
    %v495 = vpack.c.b16 %v427, %v426
    %v496 = vpack.c.b16 %v429, %v428
    %v497 = vpack.c.b16 %v431, %v430
    %v498 = vpack.c.b16 %v433, %v432
    %v499 = vpack.c.b16 %v435, %v434
    %v500 = vpack.c.b16 %v437, %v436
    %v501 = vpack.c.b16 %v439, %v438
    %v502 = vpack.c.b16 %v441, %v440
    %v503 = vpack.c.b16 %v443, %v442
    %v504 = vpack.c.b16 %v445, %v444
    %v505 = vpack.c.b16 %v447, %v446
    %v506 = vpack.c.b16 %v449, %v448
    %v507 = vpack.c.b16 %v451, %v450
    %564 = vmatpush.bf16.msra.mxu0 %v459
    %565 = vmatpush.bf16.msra.mxu0 %v458
    %566 = vmatpush.bf16.msra.mxu0 %v457
    %567 = vmatpush.bf16.msra.mxu0 %v456
    %568 = vmatpush.bf16.msra.mxu0 %v455
    %569 = vmatpush.bf16.msra.mxu0 %v454
    %570 = vmatpush.bf16.msra.mxu0 %v453
    %571 = vmatpush.bf16.msra.mxu0 %v452
    %572 = vmatmul.bf16.gmra.mxu0 %v109
    %v573 = vpop.f32.mrf.mxu0
    %v574 = vadd.f32 %v101, %v573
    %v575 = vpop.f32.mrf.mxu0
    %576 = vdwg.mxu0
    %577 = vmatpush.bf16.msra.mxu0 %v467
    %578 = vmatpush.bf16.msra.mxu0 %v466
    %579 = vmatpush.bf16.msra.mxu0 %v465
    %580 = vmatpush.bf16.msra.mxu0 %v464
    %581 = vmatpush.bf16.msra.mxu0 %v463
    %582 = vmatpush.bf16.msra.mxu0 %v462
    %583 = vmatpush.bf16.msra.mxu0 %v461
    %584 = vmatpush.bf16.msra.mxu0 %v460
    %585 = vmatmul.bf16.gmra.mxu0 %v110
    %v586 = vpop.f32.mrf.mxu0
    %v587 = vadd.f32 %v574, %v586
    %v588 = vpop.f32.mrf.mxu0
    %589 = vdwg.mxu0
    %590 = vmatpush.bf16.msra.mxu0 %v475
    %591 = vmatpush.bf16.msra.mxu0 %v474
    %592 = vmatpush.bf16.msra.mxu0 %v473
    %593 = vmatpush.bf16.msra.mxu0 %v472
    %594 = vmatpush.bf16.msra.mxu0 %v471
    %595 = vmatpush.bf16.msra.mxu0 %v470
    %596 = vmatpush.bf16.msra.mxu0 %v469
    %597 = vmatpush.bf16.msra.mxu0 %v468
    %598 = vmatmul.bf16.gmra.mxu0 %v111
    %v599 = vpop.f32.mrf.mxu0
    %v600 = vadd.f32 %v587, %v599
    %v601 = vpop.f32.mrf.mxu0
    %602 = vdwg.mxu0
    %603 = vmatpush.bf16.msra.mxu0 %v483
    %604 = vmatpush.bf16.msra.mxu0 %v482
    %605 = vmatpush.bf16.msra.mxu0 %v481
    %606 = vmatpush.bf16.msra.mxu0 %v480
    %607 = vmatpush.bf16.msra.mxu0 %v479
    %608 = vmatpush.bf16.msra.mxu0 %v478
    %609 = vmatpush.bf16.msra.mxu0 %v477
    %610 = vmatpush.bf16.msra.mxu0 %v476
    %611 = vmatmul.bf16.gmra.mxu0 %v112
    %v612 = vpop.f32.mrf.mxu0
    %v613 = vadd.f32 %v600, %v612
    %v614 = vpop.f32.mrf.mxu0
    %615 = vdwg.mxu0
    %616 = vmatpush.bf16.msra.mxu0 %v491
    %617 = vmatpush.bf16.msra.mxu0 %v490
    %618 = vmatpush.bf16.msra.mxu0 %v489
    %619 = vmatpush.bf16.msra.mxu0 %v488
    %620 = vmatpush.bf16.msra.mxu0 %v487
    %621 = vmatpush.bf16.msra.mxu0 %v486
    %622 = vmatpush.bf16.msra.mxu0 %v485
    %623 = vmatpush.bf16.msra.mxu0 %v484
    %624 = vmatmul.bf16.gmra.mxu0 %v113
    %v625 = vpop.f32.mrf.mxu0
    %v626 = vadd.f32 %v613, %v625
    %v627 = vpop.f32.mrf.mxu0
    %628 = vdwg.mxu0
    %629 = vmatpush.bf16.msra.mxu0 %v499
    %630 = vmatpush.bf16.msra.mxu0 %v498
    %631 = vmatpush.bf16.msra.mxu0 %v497
    %632 = vmatpush.bf16.msra.mxu0 %v496
    %633 = vmatpush.bf16.msra.mxu0 %v495
    %634 = vmatpush.bf16.msra.mxu0 %v494
    %635 = vmatpush.bf16.msra.mxu0 %v493
    %636 = vmatpush.bf16.msra.mxu0 %v492
    %637 = vmatmul.bf16.gmra.mxu0 %v114
    %v638 = vpop.f32.mrf.mxu0
    %v639 = vadd.f32 %v626, %v638
    %v640 = vpop.f32.mrf.mxu0
    %641 = vdwg.mxu0
    %642 = vmatpush.bf16.msra.mxu0 %v507
    %643 = vmatpush.bf16.msra.mxu0 %v506
    %644 = vmatpush.bf16.msra.mxu0 %v505
    %645 = vmatpush.bf16.msra.mxu0 %v504
    %646 = vmatpush.bf16.msra.mxu0 %v503
    %647 = vmatpush.bf16.msra.mxu0 %v502
    %648 = vmatpush.bf16.msra.mxu0 %v501
    %649 = vmatpush.bf16.msra.mxu0 %v500
    %650 = vmatmul.bf16.gmra.mxu0 %v115
    %v651 = vpop.f32.mrf.mxu0
    %v652 = vadd.f32 %v639, %v651
    %v653 = vpop.f32.mrf.mxu0
    %654 = vdwg.mxu0
    %v655 = vmax.f32 %v652, 0.0
    %v656 = vpack.c.bf16 %v655, %v655
    %v657 = vld [vmem:[%s2] sm:$0xff]
    %v658 = vld [vmem:[%s2 + $0x8] sm:$0xff]
    %v659 = vld [vmem:[%s2 + $0x10] sm:$0xff]
    %v660 = vld [vmem:[%s2 + $0x18] sm:$0xff]
    %v661 = vld [vmem:[%s2 + $0x20] sm:$0xff]
    %v662 = vld [vmem:[%s2 + $0x28] sm:$0xff]
    %v663 = vld [vmem:[%s2 + $0x30] sm:$0xff]
    %v664 = vld [vmem:[%s2 + $0x38] sm:$0xff]
    %v665 = vld [vmem:[%s2 + $0x40] sm:$0xff]
    %v666 = vld [vmem:[%s2 + $0x48] sm:$0xff]
    %v667 = vld [vmem:[%s2 + $0x50] sm:$0xff]
    %v668 = vld [vmem:[%s2 + $0x58] sm:$0xff]
    %v669 = vld [vmem:[%s2 + $0x60] sm:$0xff]
    %v670 = vld [vmem:[%s2 + $0x68] sm:$0xff]
    %v671 = vld [vmem:[%s2 + $0x70] sm:$0xff]
    %v672 = vld [vmem:[%s2 + $0x78] sm:$0xff]
    %v674 = vperm.slane %v103, 0
    %v675 = vperm.slane %v103, 1
    %v694 = vunpack.c.l.b16 %v657
    %v695 = vunpack.c.h.b16 %v657
    %v696 = vunpack.c.l.b16 %v658
    %v697 = vunpack.c.h.b16 %v658
    %v698 = vunpack.c.l.b16 %v659
    %v699 = vunpack.c.h.b16 %v659
    %v700 = vunpack.c.l.b16 %v660
    %v701 = vunpack.c.h.b16 %v660
    %v702 = vunpack.c.l.b16 %v661
    %v703 = vunpack.c.h.b16 %v661
    %v704 = vunpack.c.l.b16 %v662
    %v705 = vunpack.c.h.b16 %v662
    %v706 = vunpack.c.l.b16 %v663
    %v707 = vunpack.c.h.b16 %v663
    %v708 = vunpack.c.l.b16 %v664
    %v709 = vunpack.c.h.b16 %v664
    %v710 = vunpack.c.l.b16 %v665
    %v711 = vunpack.c.h.b16 %v665
    %v712 = vunpack.c.l.b16 %v666
    %v713 = vunpack.c.h.b16 %v666
    %v714 = vunpack.c.l.b16 %v667
    %v715 = vunpack.c.h.b16 %v667
    %v716 = vunpack.c.l.b16 %v668
    %v717 = vunpack.c.h.b16 %v668
    %v718 = vunpack.c.l.b16 %v669
    %v719 = vunpack.c.h.b16 %v669
    %v720 = vunpack.c.l.b16 %v670
    %v721 = vunpack.c.h.b16 %v670
    %v722 = vunpack.c.l.b16 %v671
    %v723 = vunpack.c.h.b16 %v671
    %v724 = vunpack.c.l.b16 %v672
    %v725 = vunpack.c.h.b16 %v672
    %v726 = vpack.c.b16 %v696, %v694
    %v727 = vpack.c.b16 %v697, %v695
    %v728 = vpack.c.b16 %v700, %v698
    %v729 = vpack.c.b16 %v701, %v699
    %v730 = vpack.c.b16 %v704, %v702
    %v731 = vpack.c.b16 %v705, %v703
    %v732 = vpack.c.b16 %v708, %v706
    %v733 = vpack.c.b16 %v709, %v707
    %v734 = vpack.c.b16 %v712, %v710
    %v735 = vpack.c.b16 %v713, %v711
    %v736 = vpack.c.b16 %v716, %v714
    %v737 = vpack.c.b16 %v717, %v715
    %v738 = vpack.c.b16 %v720, %v718
    %v739 = vpack.c.b16 %v721, %v719
    %v740 = vpack.c.b16 %v724, %v722
    %v741 = vpack.c.b16 %v725, %v723
    %758 = vmatpush.bf16.msra.mxu0 %v740
    %759 = vmatpush.bf16.msra.mxu0 %v738
    %760 = vmatpush.bf16.msra.mxu0 %v736
    %761 = vmatpush.bf16.msra.mxu0 %v734
    %762 = vmatpush.bf16.msra.mxu0 %v732
    %763 = vmatpush.bf16.msra.mxu0 %v730
    %764 = vmatpush.bf16.msra.mxu0 %v728
    %765 = vmatpush.bf16.msra.mxu0 %v726
    %766 = vmatmul.bf16.gmra.mxu0 %v656
    %v767 = vpop.f32.mrf.mxu0
    %v768 = vadd.f32 %v674, %v767
    %v769 = vpop.f32.mrf.mxu0
    %770 = vdwg.mxu0
    %771 = vmatpush.bf16.msra.mxu0 %v741
    %772 = vmatpush.bf16.msra.mxu0 %v739
    %773 = vmatpush.bf16.msra.mxu0 %v737
    %774 = vmatpush.bf16.msra.mxu0 %v735
    %775 = vmatpush.bf16.msra.mxu0 %v733
    %776 = vmatpush.bf16.msra.mxu0 %v731
    %777 = vmatpush.bf16.msra.mxu0 %v729
    %778 = vmatpush.bf16.msra.mxu0 %v727
    %779 = vmatmul.bf16.gmra.mxu0 %v656
    %v780 = vpop.f32.mrf.mxu0
    %v781 = vadd.f32 %v675, %v780
    %v782 = vpop.f32.mrf.mxu0
    %783 = vdwg.mxu0
    %v784 = vmul.f32 %v781, 0.5
    %v785 = vmul.f32 %v784, 1.442695
    %v786 = vpow.pop %v785
    %v787 = vmul.f32 %v786, %v72
    %v788 = vadd.f32 %v768, %v787
    %v789 = vpack.c.bf16 %v788, %v788
    %v790 = vld [vmem:[%s3] sm:$0xf]
    %v791 = vld [vmem:[%s3 + $0x4] sm:$0xf]
    %v792 = vld [vmem:[%s3 + $0x8] sm:$0xf]
    %v793 = vld [vmem:[%s3 + $0xc] sm:$0xf]
    %v794 = vld [vmem:[%s3 + $0x10] sm:$0xf]
    %v795 = vld [vmem:[%s3 + $0x14] sm:$0xf]
    %v796 = vld [vmem:[%s3 + $0x18] sm:$0xf]
    %v797 = vld [vmem:[%s3 + $0x1c] sm:$0xf]
    %v798 = vld [vmem:[%s3 + $0x20] sm:$0xf]
    %v799 = vld [vmem:[%s3 + $0x24] sm:$0xf]
    %v800 = vld [vmem:[%s3 + $0x28] sm:$0xf]
    %v801 = vld [vmem:[%s3 + $0x2c] sm:$0xf]
    %v802 = vld [vmem:[%s3 + $0x30] sm:$0xf]
    %v803 = vld [vmem:[%s3 + $0x34] sm:$0xf]
    %v804 = vld [vmem:[%s3 + $0x38] sm:$0xf]
    %v805 = vld [vmem:[%s3 + $0x3c] sm:$0xf]
    %v822 = vunpack.c.l.b16 %v790
    %v823 = vunpack.c.l.b16 %v791
    %v824 = vunpack.c.l.b16 %v792
    %v825 = vunpack.c.l.b16 %v793
    %v826 = vunpack.c.l.b16 %v794
    %v827 = vunpack.c.l.b16 %v795
    %v828 = vunpack.c.l.b16 %v796
    %v829 = vunpack.c.l.b16 %v797
    %v830 = vunpack.c.l.b16 %v798
    %v831 = vunpack.c.l.b16 %v799
    %v832 = vunpack.c.l.b16 %v800
    %v833 = vunpack.c.l.b16 %v801
    %v834 = vunpack.c.l.b16 %v802
    %v835 = vunpack.c.l.b16 %v803
    %v836 = vunpack.c.l.b16 %v804
    %v837 = vunpack.c.l.b16 %v805
    %v838 = vpack.c.b16 %v823, %v822
    %v839 = vpack.c.b16 %v825, %v824
    %v840 = vpack.c.b16 %v827, %v826
    %v841 = vpack.c.b16 %v829, %v828
    %v842 = vpack.c.b16 %v831, %v830
    %v843 = vpack.c.b16 %v833, %v832
    %v844 = vpack.c.b16 %v835, %v834
    %v845 = vpack.c.b16 %v837, %v836
    %854 = vmatpush.bf16.msra.mxu0 %v845
    %855 = vmatpush.bf16.msra.mxu0 %v844
    %856 = vmatpush.bf16.msra.mxu0 %v843
    %857 = vmatpush.bf16.msra.mxu0 %v842
    %858 = vmatpush.bf16.msra.mxu0 %v841
    %859 = vmatpush.bf16.msra.mxu0 %v840
    %860 = vmatpush.bf16.msra.mxu0 %v839
    %861 = vmatpush.bf16.msra.mxu0 %v838
    %862 = vmatmul.bf16.gmra.mxu0 %v789
    %v863 = vpop.f32.mrf.mxu0
    %v864 = vadd.f32 %v104, %v863
    %v865 = vpop.f32.mrf.mxu0
    %866 = vdwg.mxu0
    %v867 = vmax.f32 %v864, 0.0
    %v868 = vpack.c.bf16 %v867, %v867
    %v869 = vld [vmem:[#allocation4] sm:$0xff]
    %v870 = vld [vmem:[#allocation4 + $0x8] sm:$0xff]
    %v871 = vld [vmem:[#allocation4 + $0x10] sm:$0xff]
    %v872 = vld [vmem:[#allocation4 + $0x18] sm:$0xf]
    %v873 = vld [vmem:[#allocation4 + $0x1c] sm:$0xff]
    %v874 = vld [vmem:[#allocation4 + $0x24] sm:$0xff]
    %v875 = vld [vmem:[#allocation4 + $0x2c] sm:$0xff]
    %v876 = vld [vmem:[#allocation4 + $0x34] sm:$0xf]
    %v877 = vld [vmem:[#allocation4 + $0x38] sm:$0xff]
    %v878 = vld [vmem:[#allocation4 + $0x40] sm:$0xff]
    %v879 = vld [vmem:[#allocation4 + $0x48] sm:$0xff]
    %v880 = vld [vmem:[#allocation4 + $0x50] sm:$0xf]
    %v881 = vld [vmem:[#allocation4 + $0x54] sm:$0xff]
    %v882 = vld [vmem:[#allocation4 + $0x5c] sm:$0xff]
    %v883 = vld [vmem:[#allocation4 + $0x64] sm:$0xff]
    %v884 = vld [vmem:[#allocation4 + $0x6c] sm:$0xf]
    %v885 = vld [vmem:[#allocation4 + $0x70] sm:$0xff]
    %v886 = vld [vmem:[#allocation4 + $0x78] sm:$0xff]
    %v887 = vld [vmem:[#allocation4 + $0x80] sm:$0xff]
    %v888 = vld [vmem:[#allocation4 + $0x88] sm:$0xf]
    %v889 = vld [vmem:[#allocation4 + $0x8c] sm:$0xff]
    %v890 = vld [vmem:[#allocation4 + $0x94] sm:$0xff]
    %v891 = vld [vmem:[#allocation4 + $0x9c] sm:$0xff]
    %v892 = vld [vmem:[#allocation4 + $0xa4] sm:$0xf]
    %v893 = vld [vmem:[#allocation4 + $0xa8] sm:$0xff]
    %v894 = vld [vmem:[#allocation4 + $0xb0] sm:$0xff]
    %v895 = vld [vmem:[#allocation4 + $0xb8] sm:$0xff]
    %v896 = vld [vmem:[#allocation4 + $0xc0] sm:$0xf]
    %v897 = vld [vmem:[#allocation4 + $0xc4] sm:$0xff]
    %v898 = vld [vmem:[#allocation4 + $0xcc] sm:$0xff]
    %v899 = vld [vmem:[#allocation4 + $0xd4] sm:$0xff]
    %v900 = vld [vmem:[#allocation4 + $0xdc] sm:$0xf]
    %v901 = vld [vmem:[#allocation4 + $0xe0] sm:$0xff]
    %v902 = vld [vmem:[#allocation4 + $0xe8] sm:$0xff]
    %v903 = vld [vmem:[#allocation4 + $0xf0] sm:$0xff]
    %v904 = vld [vmem:[#allocation4 + $0xf8] sm:$0xf]
    %v905 = vld [vmem:[#allocation4 + $0xfc] sm:$0xff]
    %v906 = vld [vmem:[#allocation4 + $0x104] sm:$0xff]
    %v907 = vld [vmem:[#allocation4 + $0x10c] sm:$0xff]
    %v908 = vld [vmem:[#allocation4 + $0x114] sm:$0xf]
    %v909 = vld [vmem:[#allocation4 + $0x118] sm:$0xff]
    %v910 = vld [vmem:[#allocation4 + $0x120] sm:$0xff]
    %v911 = vld [vmem:[#allocation4 + $0x128] sm:$0xff]
    %v912 = vld [vmem:[#allocation4 + $0x130] sm:$0xf]
    %v913 = vld [vmem:[#allocation4 + $0x134] sm:$0xff]
    %v914 = vld [vmem:[#allocation4 + $0x13c] sm:$0xff]
    %v915 = vld [vmem:[#allocation4 + $0x144] sm:$0xff]
    %v916 = vld [vmem:[#allocation4 + $0x14c] sm:$0xf]
    %v917 = vld [vmem:[#allocation4 + $0x150] sm:$0xff]
    %v918 = vld [vmem:[#allocation4 + $0x158] sm:$0xff]
    %v919 = vld [vmem:[#allocation4 + $0x160] sm:$0xff]
    %v920 = vld [vmem:[#allocation4 + $0x168] sm:$0xf]
    %v921 = vld [vmem:[#allocation4 + $0x16c] sm:$0xff]
    %v922 = vld [vmem:[#allocation4 + $0x174] sm:$0xff]
    %v923 = vld [vmem:[#allocation4 + $0x17c] sm:$0xff]
    %v924 = vld [vmem:[#allocation4 + $0x184] sm:$0xf]
    %v925 = vld [vmem:[#allocation4 + $0x188] sm:$0xff]
    %v926 = vld [vmem:[#allocation4 + $0x190] sm:$0xff]
    %v927 = vld [vmem:[#allocation4 + $0x198] sm:$0xff]
    %v928 = vld [vmem:[#allocation4 + $0x1a0] sm:$0xf]
    %v929 = vld [vmem:[#allocation4 + $0x1a4] sm:$0xff]
    %v930 = vld [vmem:[#allocation4 + $0x1ac] sm:$0xff]
    %v931 = vld [vmem:[#allocation4 + $0x1b4] sm:$0xff]
    %v932 = vld [vmem:[#allocation4 + $0x1bc] sm:$0xf]
    %v934 = vperm.slane %v108, 0
    %v935 = vperm.slane %v108, 1
    %v936 = vperm.slane %v108, 2
    %v937 = vperm.slane %v108, 3
    %v938 = vperm.slane %v108, 4
    %v939 = vperm.slane %v108, 5
    %v940 = vperm.slane %v108, 6
    %v1012 = vunpack.c.l.b16 %v869
    %v1013 = vunpack.c.h.b16 %v869
    %v1014 = vunpack.c.l.b16 %v870
    %v1015 = vunpack.c.h.b16 %v870
    %v1016 = vunpack.c.l.b16 %v871
    %v1017 = vunpack.c.h.b16 %v871
    %v1018 = vunpack.c.l.b16 %v872
    %v1019 = vunpack.c.l.b16 %v873
    %v1020 = vunpack.c.h.b16 %v873
    %v1021 = vunpack.c.l.b16 %v874
    %v1022 = vunpack.c.h.b16 %v874
    %v1023 = vunpack.c.l.b16 %v875
    %v1024 = vunpack.c.h.b16 %v875
    %v1025 = vunpack.c.l.b16 %v876
    %v1026 = vunpack.c.l.b16 %v877
    %v1027 = vunpack.c.h.b16 %v877
    %v1028 = vunpack.c.l.b16 %v878
    %v1029 = vunpack.c.h.b16 %v878
    %v1030 = vunpack.c.l.b16 %v879
    %v1031 = vunpack.c.h.b16 %v879
    %v1032 = vunpack.c.l.b16 %v880
    %v1033 = vunpack.c.l.b16 %v881
    %v1034 = vunpack.c.h.b16 %v881
    %v1035 = vunpack.c.l.b16 %v882
    %v1036 = vunpack.c.h.b16 %v882
    %v1037 = vunpack.c.l.b16 %v883
    %v1038 = vunpack.c.h.b16 %v883
    %v1039 = vunpack.c.l.b16 %v884
    %v1040 = vunpack.c.l.b16 %v885
    %v1041 = vunpack.c.h.b16 %v885
    %v1042 = vunpack.c.l.b16 %v886
    %v1043 = vunpack.c.h.b16 %v886
    %v1044 = vunpack.c.l.b16 %v887
    %v1045 = vunpack.c.h.b16 %v887
    %v1046 = vunpack.c.l.b16 %v888
    %v1047 = vunpack.c.l.b16 %v889
    %v1048 = vunpack.c.h.b16 %v889
    %v1049 = vunpack.c.l.b16 %v890
    %v1050 = vunpack.c.h.b16 %v890
    %v1051 = vunpack.c.l.b16 %v891
    %v1052 = vunpack.c.h.b16 %v891
    %v1053 = vunpack.c.l.b16 %v892
    %v1054 = vunpack.c.l.b16 %v893
    %v1055 = vunpack.c.h.b16 %v893
    %v1056 = vunpack.c.l.b16 %v894
    %v1057 = vunpack.c.h.b16 %v894
    %v1058 = vunpack.c.l.b16 %v895
    %v1059 = vunpack.c.h.b16 %v895
    %v1060 = vunpack.c.l.b16 %v896
    %v1061 = vunpack.c.l.b16 %v897
    %v1062 = vunpack.c.h.b16 %v897
    %v1063 = vunpack.c.l.b16 %v898
    %v1064 = vunpack.c.h.b16 %v898
    %v1065 = vunpack.c.l.b16 %v899
    %v1066 = vunpack.c.h.b16 %v899
    %v1067 = vunpack.c.l.b16 %v900
    %v1068 = vunpack.c.l.b16 %v901
    %v1069 = vunpack.c.h.b16 %v901
    %v1070 = vunpack.c.l.b16 %v902
    %v1071 = vunpack.c.h.b16 %v902
    %v1072 = vunpack.c.l.b16 %v903
    %v1073 = vunpack.c.h.b16 %v903
    %v1074 = vunpack.c.l.b16 %v904
    %v1075 = vunpack.c.l.b16 %v905
    %v1076 = vunpack.c.h.b16 %v905
    %v1077 = vunpack.c.l.b16 %v906
    %v1078 = vunpack.c.h.b16 %v906
    %v1079 = vunpack.c.l.b16 %v907
    %v1080 = vunpack.c.h.b16 %v907
    %v1081 = vunpack.c.l.b16 %v908
    %v1082 = vunpack.c.l.b16 %v909
    %v1083 = vunpack.c.h.b16 %v909
    %v1084 = vunpack.c.l.b16 %v910
    %v1085 = vunpack.c.h.b16 %v910
    %v1086 = vunpack.c.l.b16 %v911
    %v1087 = vunpack.c.h.b16 %v911
    %v1088 = vunpack.c.l.b16 %v912
    %v1089 = vunpack.c.l.b16 %v913
    %v1090 = vunpack.c.h.b16 %v913
    %v1091 = vunpack.c.l.b16 %v914
    %v1092 = vunpack.c.h.b16 %v914
    %v1093 = vunpack.c.l.b16 %v915
    %v1094 = vunpack.c.h.b16 %v915
    %v1095 = vunpack.c.l.b16 %v916
    %v1096 = vunpack.c.l.b16 %v917
    %v1097 = vunpack.c.h.b16 %v917
    %v1098 = vunpack.c.l.b16 %v918
    %v1099 = vunpack.c.h.b16 %v918
    %v1100 = vunpack.c.l.b16 %v919
    %v1101 = vunpack.c.h.b16 %v919
    %v1102 = vunpack.c.l.b16 %v920
    %v1103 = vunpack.c.l.b16 %v921
    %v1104 = vunpack.c.h.b16 %v921
    %v1105 = vunpack.c.l.b16 %v922
    %v1106 = vunpack.c.h.b16 %v922
    %v1107 = vunpack.c.l.b16 %v923
    %v1108 = vunpack.c.h.b16 %v923
    %v1109 = vunpack.c.l.b16 %v924
    %v1110 = vunpack.c.l.b16 %v925
    %v1111 = vunpack.c.h.b16 %v925
    %v1112 = vunpack.c.l.b16 %v926
    %v1113 = vunpack.c.h.b16 %v926
    %v1114 = vunpack.c.l.b16 %v927
    %v1115 = vunpack.c.h.b16 %v927
    %v1116 = vunpack.c.l.b16 %v928
    %v1117 = vunpack.c.l.b16 %v929
    %v1118 = vunpack.c.h.b16 %v929
    %v1119 = vunpack.c.l.b16 %v930
    %v1120 = vunpack.c.h.b16 %v930
    %v1121 = vunpack.c.l.b16 %v931
    %v1122 = vunpack.c.h.b16 %v931
    %v1123 = vunpack.c.l.b16 %v932
    %v1124 = vpack.c.b16 %v1019, %v1012
    %v1125 = vpack.c.b16 %v1020, %v1013
    %v1126 = vpack.c.b16 %v1021, %v1014
    %v1127 = vpack.c.b16 %v1022, %v1015
    %v1128 = vpack.c.b16 %v1023, %v1016
    %v1129 = vpack.c.b16 %v1024, %v1017
    %v1130 = vpack.c.b16 %v1025, %v1018
    %v1131 = vpack.c.b16 %v1033, %v1026
    %v1132 = vpack.c.b16 %v1034, %v1027
    %v1133 = vpack.c.b16 %v1035, %v1028
    %v1134 = vpack.c.b16 %v1036, %v1029
    %v1135 = vpack.c.b16 %v1037, %v1030
    %v1136 = vpack.c.b16 %v1038, %v1031
    %v1137 = vpack.c.b16 %v1039, %v1032
    %v1138 = vpack.c.b16 %v1047, %v1040
    %v1139 = vpack.c.b16 %v1048, %v1041
    %v1140 = vpack.c.b16 %v1049, %v1042
    %v1141 = vpack.c.b16 %v1050, %v1043
    %v1142 = vpack.c.b16 %v1051, %v1044
    %v1143 = vpack.c.b16 %v1052, %v1045
    %v1144 = vpack.c.b16 %v1053, %v1046
    %v1145 = vpack.c.b16 %v1061, %v1054
    %v1146 = vpack.c.b16 %v1062, %v1055
    %v1147 = vpack.c.b16 %v1063, %v1056
    %v1148 = vpack.c.b16 %v1064, %v1057
    %v1149 = vpack.c.b16 %v1065, %v1058
    %v1150 = vpack.c.b16 %v1066, %v1059
    %v1151 = vpack.c.b16 %v1067, %v1060
    %v1152 = vpack.c.b16 %v1075, %v1068
    %v1153 = vpack.c.b16 %v1076, %v1069
    %v1154 = vpack.c.b16 %v1077, %v1070
    %v1155 = vpack.c.b16 %v1078, %v1071
    %v1156 = vpack.c.b16 %v1079, %v1072
    %v1157 = vpack.c.b16 %v1080, %v1073
    %v1158 = vpack.c.b16 %v1081, %v1074
    %v1159 = vpack.c.b16 %v1089, %v1082
    %v1160 = vpack.c.b16 %v1090, %v1083
    %v1161 = vpack.c.b16 %v1091, %v1084
    %v1162 = vpack.c.b16 %v1092, %v1085
    %v1163 = vpack.c.b16 %v1093, %v1086
    %v1164 = vpack.c.b16 %v1094, %v1087
    %v1165 = vpack.c.b16 %v1095, %v1088
    %v1166 = vpack.c.b16 %v1103, %v1096
    %v1167 = vpack.c.b16 %v1104, %v1097
    %v1168 = vpack.c.b16 %v1105, %v1098
    %v1169 = vpack.c.b16 %v1106, %v1099
    %v1170 = vpack.c.b16 %v1107, %v1100
    %v1171 = vpack.c.b16 %v1108, %v1101
    %v1172 = vpack.c.b16 %v1109, %v1102
    %v1173 = vpack.c.b16 %v1117, %v1110
    %v1174 = vpack.c.b16 %v1118, %v1111
    %v1175 = vpack.c.b16 %v1119, %v1112
    %v1176 = vpack.c.b16 %v1120, %v1113
    %v1177 = vpack.c.b16 %v1121, %v1114
    %v1178 = vpack.c.b16 %v1122, %v1115
    %v1179 = vpack.c.b16 %v1123, %v1116
    %1236 = vmatpush.bf16.msra.mxu0 %v1173
    %1237 = vmatpush.bf16.msra.mxu0 %v1166
    %1238 = vmatpush.bf16.msra.mxu0 %v1159
    %1239 = vmatpush.bf16.msra.mxu0 %v1152
    %1240 = vmatpush.bf16.msra.mxu0 %v1145
    %1241 = vmatpush.bf16.msra.mxu0 %v1138
    %1242 = vmatpush.bf16.msra.mxu0 %v1131
    %1243 = vmatpush.bf16.msra.mxu0 %v1124
    %1244 = vmatmul.bf16.gmra.mxu0 %v868
    %v1245 = vpop.f32.mrf.mxu0
    %v1246 = vadd.f32 %v934, %v1245
    %v1247 = vpop.f32.mrf.mxu0
    %1248 = vdwg.mxu0
    %1249 = vmatpush.bf16.msra.mxu0 %v1174
    %1250 = vmatpush.bf16.msra.mxu0 %v1167
    %1251 = vmatpush.bf16.msra.mxu0 %v1160
    %1252 = vmatpush.bf16.msra.mxu0 %v1153
    %1253 = vmatpush.bf16.msra.mxu0 %v1146
    %1254 = vmatpush.bf16.msra.mxu0 %v1139
    %1255 = vmatpush.bf16.msra.mxu0 %v1132
    %1256 = vmatpush.bf16.msra.mxu0 %v1125
    %1257 = vmatmul.bf16.gmra.mxu0 %v868
    %v1258 = vpop.f32.mrf.mxu0
    %v1259 = vadd.f32 %v935, %v1258
    %v1260 = vpop.f32.mrf.mxu0
    %1261 = vdwg.mxu0
    %1262 = vmatpush.bf16.msra.mxu0 %v1175
    %1263 = vmatpush.bf16.msra.mxu0 %v1168
    %1264 = vmatpush.bf16.msra.mxu0 %v1161
    %1265 = vmatpush.bf16.msra.mxu0 %v1154
    %1266 = vmatpush.bf16.msra.mxu0 %v1147
    %1267 = vmatpush.bf16.msra.mxu0 %v1140
    %1268 = vmatpush.bf16.msra.mxu0 %v1133
    %1269 = vmatpush.bf16.msra.mxu0 %v1126
    %1270 = vmatmul.bf16.gmra.mxu0 %v868
    %v1271 = vpop.f32.mrf.mxu0
    %v1272 = vadd.f32 %v936, %v1271
    %v1273 = vpop.f32.mrf.mxu0
    %1274 = vdwg.mxu0
    %1275 = vmatpush.bf16.msra.mxu0 %v1176
    %1276 = vmatpush.bf16.msra.mxu0 %v1169
    %1277 = vmatpush.bf16.msra.mxu0 %v1162
    %1278 = vmatpush.bf16.msra.mxu0 %v1155
    %1279 = vmatpush.bf16.msra.mxu0 %v1148
    %1280 = vmatpush.bf16.msra.mxu0 %v1141
    %1281 = vmatpush.bf16.msra.mxu0 %v1134
    %1282 = vmatpush.bf16.msra.mxu0 %v1127
    %1283 = vmatmul.bf16.gmra.mxu0 %v868
    %v1284 = vpop.f32.mrf.mxu0
    %v1285 = vadd.f32 %v937, %v1284
    %v1286 = vpop.f32.mrf.mxu0
    %1287 = vdwg.mxu0
    %1288 = vmatpush.bf16.msra.mxu0 %v1177
    %1289 = vmatpush.bf16.msra.mxu0 %v1170
    %1290 = vmatpush.bf16.msra.mxu0 %v1163
    %1291 = vmatpush.bf16.msra.mxu0 %v1156
    %1292 = vmatpush.bf16.msra.mxu0 %v1149
    %1293 = vmatpush.bf16.msra.mxu0 %v1142
    %1294 = vmatpush.bf16.msra.mxu0 %v1135
    %1295 = vmatpush.bf16.msra.mxu0 %v1128
    %1296 = vmatmul.bf16.gmra.mxu0 %v868
    %v1297 = vpop.f32.mrf.mxu0
    %v1298 = vadd.f32 %v938, %v1297
    %v1299 = vpop.f32.mrf.mxu0
    %1300 = vdwg.mxu0
    %1301 = vmatpush.bf16.msra.mxu0 %v1178
    %1302 = vmatpush.bf16.msra.mxu0 %v1171
    %1303 = vmatpush.bf16.msra.mxu0 %v1164
    %1304 = vmatpush.bf16.msra.mxu0 %v1157
    %1305 = vmatpush.bf16.msra.mxu0 %v1150
    %1306 = vmatpush.bf16.msra.mxu0 %v1143
    %1307 = vmatpush.bf16.msra.mxu0 %v1136
    %1308 = vmatpush.bf16.msra.mxu0 %v1129
    %1309 = vmatmul.bf16.gmra.mxu0 %v868
    %v1310 = vpop.f32.mrf.mxu0
    %v1311 = vadd.f32 %v939, %v1310
    %v1312 = vpop.f32.mrf.mxu0
    %1313 = vdwg.mxu0
    %1314 = vmatpush.bf16.msra.mxu0 %v1179
    %1315 = vmatpush.bf16.msra.mxu0 %v1172
    %1316 = vmatpush.bf16.msra.mxu0 %v1165
    %1317 = vmatpush.bf16.msra.mxu0 %v1158
    %1318 = vmatpush.bf16.msra.mxu0 %v1151
    %1319 = vmatpush.bf16.msra.mxu0 %v1144
    %1320 = vmatpush.bf16.msra.mxu0 %v1137
    %1321 = vmatpush.bf16.msra.mxu0 %v1130
    %1322 = vmatmul.bf16.gmra.mxu0 %v868
    %v1323 = vpop.f32.mrf.mxu0
    %v1324 = vadd.f32 %v940, %v1323
    %v1325 = vpop.f32.mrf.mxu0
    %1326 = vdwg.mxu0
    %v1327 = vsub.f32 0.0, %v1246
    %v1328 = vsub.f32 0.0, %v1259
    %v1329 = vsub.f32 0.0, %v1272
    %v1330 = vsub.f32 0.0, %v1285
    %v1331 = vsub.f32 0.0, %v1298
    %v1332 = vsub.f32 0.0, %v1311
    %v1333 = vsub.f32 0.0, %v1324
    %v1334 = vmul.f32 %v1327, 1.442695
    %v1335 = vpow.pop %v1334
    %v1336 = vmul.f32 %v1328, 1.442695
    %v1337 = vpow.pop %v1336
    %v1338 = vmul.f32 %v1329, 1.442695
    %v1339 = vpow.pop %v1338
    %v1340 = vmul.f32 %v1330, 1.442695
    %v1341 = vpow.pop %v1340
    %v1342 = vmul.f32 %v1331, 1.442695
    %v1343 = vpow.pop %v1342
    %v1344 = vmul.f32 %v1332, 1.442695
    %v1345 = vpow.pop %v1344
    %v1346 = vmul.f32 %v1333, 1.442695
    %v1347 = vpow.pop %v1346
    %v1348 = vadd.f32 %v1335, 1.0
    %v1349 = vadd.f32 %v1337, 1.0
    %v1350 = vadd.f32 %v1339, 1.0
    %v1351 = vadd.f32 %v1341, 1.0
    %v1352 = vadd.f32 %v1343, 1.0
    %v1353 = vadd.f32 %v1345, 1.0
    %v1354 = vadd.f32 %v1347, 1.0
    %v1355 = vrcp.pop %v1348
    %v1356 = vrcp.pop %v1349
    %v1357 = vrcp.pop %v1350
    %v1358 = vrcp.pop %v1351
    %v1359 = vrcp.pop %v1352
    %v1360 = vrcp.pop %v1353
    %v1361 = vrcp.pop %v1354
    %1362 = vst [vmem:[%s6] sm:$0xff] %v1355
    %1363 = vst [vmem:[%s6 + $0x8] sm:$0xff] %v1356
    %1364 = vst [vmem:[%s6 + $0x10] sm:$0xff] %v1357
    %1365 = vst [vmem:[%s6 + $0x18] sm:$0xff] %v1358
    %1366 = vst [vmem:[%s6 + $0x20] sm:$0xff] %v1359
    %1367 = vst [vmem:[%s6 + $0x28] sm:$0xff] %v1360
    %1368 = vst [vmem:[%s6 + $0x30] sm:$0xff] %v1361
    %1369 = vst [vmem:[%s7] sm:$0xff] %v768
    %1370 = vst [vmem:[%s8] sm:$0xff] %v781
    // Predicated region
    $region34: #{vae_forward.1} parent=1 // pred_check
      _
    $region35: #{vae_forward.1} parent=1 // pred_check_branch
      %1372 = sbr.rel (0) target = $region37
    $region36: #{vae_forward.1} parent=1 // pred_region
      _
    $region37: #{vae_forward.1} parent=1 // pred_fallthru
      _
    // Predicated region
    $region38: #{vae_forward.1} parent=1 // pred_check
      _
    $region39: #{vae_forward.1} parent=1 // pred_check_branch
      %1374 = sbr.rel (0) target = $region41
    $region40: #{vae_forward.1} parent=1 // pred_region
      _
    $region41: #{vae_forward.1} parent=1 // pred_fallthru
      _
    // Predicated region
    $region42: #{vae_forward.1} parent=1 // pred_check
      _
    $region43: #{vae_forward.1} parent=1 // pred_check_branch
      %1376 = sbr.rel (0) target = $region45
    $region44: #{vae_forward.1} parent=1 // pred_region
      _
    $region45: #{vae_forward.1} parent=1 // pred_fallthru
      _
    // Predicated region
    $region46: #{vae_forward.1} parent=1 // pred_check
      _
    $region47: #{vae_forward.1} parent=1 // pred_check_branch
      %1378 = sbr.rel (0) target = $region49
    $region48: #{vae_forward.1} parent=1 // pred_region
      _
    $region49: #{vae_forward.1} parent=1 // pred_fallthru
      _
    // Predicated region
    $region50: #{vae_forward.1} parent=1 // pred_check
      _
    $region51: #{vae_forward.1} parent=1 // pred_check_branch
      %1380 = sbr.rel (0) target = $region53
    $region52: #{vae_forward.1} parent=1 // pred_region
      _
    $region53: #{vae_forward.1} parent=1 // pred_fallthru
      _
    // Predicated region
    $region54: #{vae_forward.1} parent=1 // pred_check
      _
    $region55: #{vae_forward.1} parent=1 // pred_check_branch
      %1382 = sbr.rel (0) target = $region57
    $region56: #{vae_forward.1} parent=1 // pred_region
      _
    $region57: #{vae_forward.1} parent=1 // pred_fallthru
      _
    %1383 = vsyncpa [#allocation3], 1
    %1384 = vsyncpa [#allocation5], 1

</llo_original>
